<compile_context>
chip_gen: v5e
topology: v5e:2x2
jax: 0.10.0
libtpu: 0.0.40
codegen_flags: <defaults>
</compile_context>

<pallas_src>
import functools

import jax
import jax.numpy as jnp
from jax.experimental import pallas as pl
from jax.experimental.pallas import tpu as pltpu


def _replicate_pad_kernel(x_ref, o_ref, *, length):
    """x_ref block: (TB, H, W); o_ref block: (TB, H + 2L, W + 2L)."""
    L = length
    TB, H, W = x_ref.shape
    Wp = o_ref.shape[2]  # W + 2L

    # Build the full padded-width interior row block once (lane-dense).  Strip
    # sources are read straight from the input ref so Mosaic can stream
    # load -> assemble -> store without extra VMEM copies.
    left = jnp.broadcast_to(x_ref[:, :, :1], (TB, H, L))
    right = jnp.broadcast_to(x_ref[:, :, W - 1:], (TB, H, L))
    rows = jnp.concatenate([left, x_ref[...], right], axis=2)  # (TB, H, Wp)

    # Interior rows: one full-width (lane-dense) store.
    o_ref[:, L:L + H, :] = rows

    # Top / bottom strips reuse the already-computed first/last padded row
    # (corner values included) -- no read-back from o_ref.
    o_ref[:, :L, :] = jnp.broadcast_to(rows[:, :1, :], (TB, L, Wp))
    o_ref[:, L + H:, :] = jnp.broadcast_to(rows[:, H - 1:H, :], (TB, L, Wp))


def _round_up(a, m):
    return (a + m - 1) // m * m


def _num_tensorcores():
    """Best-effort TensorCores per Pallas device (v5e/v6e: 1; v4/v5p/v7x: 2)."""
    try:
        kind = (jax.devices()[0].device_kind or "").lower()
    except Exception:
        return 2
    single_tc = ("v5e", "v5 lite", "v5litepod", "v6e", "v6 lite", "v6litepod")
    if any(t in kind for t in single_tc):
        return 1
    return 2  # conservative default: forcing >=2 steps costs ~0.35 us at most


def _choose_tb(n_planes, in_plane_bytes, out_plane_bytes, num_cores):
    """How many (H, W) planes to process per grid step (padded-byte budget)."""
    budget = 8 << 20  # padded (in + out) bytes per step; x2 when double-buffered
    tb = max(1, budget // (in_plane_bytes + out_plane_bytes))
    if num_cores > 1 and n_planes >= num_cores:
        # Keep at least one step per TensorCore so the "parallel" axis can shard.
        tb = min(tb, (n_planes + num_cores - 1) // num_cores)
    return int(max(1, min(tb, n_planes)))


def new_pad2d(x, length):
    """Pallas equivalent of newPad2d(length).forward(x) for NCHW input."""
    B, C, H, W = x.shape
    L = int(length)
    if L == 0:
        return x  # zero-width pad: module returns the input unchanged

    Hp, Wp = H + 2 * L, W + 2 * L
    N = B * C
    itemsize = jnp.dtype(x.dtype).itemsize

    # (sublane, lane) padded VMEM footprint per plane.
    sub = max(8, 32 // itemsize)  # 8 for 32-bit, 16 for bf16, 32 for int8/fp8
    in_plane = _round_up(H, sub) * _round_up(W, 128) * itemsize
    out_plane = _round_up(Hp, sub) * _round_up(Wp, 128) * itemsize

    TB = _choose_tb(N, in_plane, out_plane, _num_tensorcores())
    grid = (pl.cdiv(N, TB),)  # ragged last block is fine (independent planes)

    # Double-buffered in+out blocks plus slack for the in-kernel `rows` value.
    db_bytes = 2 * TB * (in_plane + out_plane)
    vmem_need = db_bytes + TB * out_plane

    compiler_kwargs = dict(dimension_semantics=("parallel",))
    if vmem_need > (16 << 20):
        # Never set below the v6e/v7x default (32 MiB); cap at 48 MiB (safe on
        # v7x's 64 MiB physical VMEM per TensorCore).
        compiler_kwargs["vmem_limit_bytes"] = int(
            min(max(vmem_need, 32 << 20), 48 << 20))

    cost = pl.CostEstimate(
        flops=0,
        transcendentals=0,
        bytes_accessed=int(N * (H * W + Hp * Wp) * itemsize),
    )

    x2 = x.reshape(N, H, W)

    out = pl.pallas_call(
        functools.partial(_replicate_pad_kernel, length=L),
        out_shape=jax.ShapeDtypeStruct((N, Hp, Wp), x.dtype),
        grid=grid,
        in_specs=[pl.BlockSpec((TB, H, W), lambda i: (i, 0, 0))],
        out_specs=pl.BlockSpec((TB, Hp, Wp), lambda i: (i, 0, 0)),
        compiler_params=pltpu.CompilerParams(**compiler_kwargs),
        cost_estimate=cost,
    )(x2)

    return out.reshape(B, C, Hp, Wp)


if __name__ == "__main__":
    key = jax.random.PRNGKey(0)
    B, C, H, W = 2, 4, 16, 16
    length = 2  # newPad2d(length) -- no learned parameters

    x = jax.random.normal(key, (B, C, H, W), dtype=jnp.float32)

    out = jax.block_until_ready(new_pad2d(x, length))

    # Reference: replicate/edge padding on H, W only.
    ref = jnp.pad(x, ((0, 0), (0, 0), (length, length), (length, length)),
                  mode="edge")

    assert out.shape == (B, C, H + 2 * length, W + 2 * length), out.shape
    assert out.dtype == x.dtype
    assert jnp.allclose(out, ref), "mismatch vs. edge-pad reference"

    print("KERNEL_OK")
</pallas_src>

<mosaic_0001>
module attributes {stable_mosaic.version = 11 : i64} {
  func.func @_replicate_pad_kernel(%arg0: i32, %arg1: memref<4x16x16xf32, #tpu.memory_space<vmem>>, %arg2: memref<4x20x20xf32, #tpu.memory_space<vmem>>) attributes {dimension_semantics = [#tpu.dimension_semantics<parallel>], iteration_bounds = array<i64: 2>, scalar_prefetch = 0 : i64, scratch_operands = 0 : i64, tpu.core_type = #tpu.core_type<tc>, window_params = [{transform_indices = @transform_0, window_bounds = array<i64: 4, 16, 16>}, {transform_indices = @transform_1, window_bounds = array<i64: 4, 20, 20>}]} {
    %c0 = arith.constant 0 : index
    %c0_0 = arith.constant 0 : index
    %c0_1 = arith.constant 0 : index
    %0 = vector.load %arg1[%c0, %c0_0, %c0_1] : memref<4x16x16xf32, #tpu.memory_space<vmem>>, vector<4x16x1xf32>
    %1 = vector.shape_cast %0 : vector<4x16x1xf32> to vector<4x16x1xf32>
    %2 = vector.broadcast %1 : vector<4x16x1xf32> to vector<4x16x2xf32>
    %c0_2 = arith.constant 0 : index
    %c0_3 = arith.constant 0 : index
    %c15 = arith.constant 15 : index
    %3 = vector.load %arg1[%c0_2, %c0_3, %c15] : memref<4x16x16xf32, #tpu.memory_space<vmem>>, vector<4x16x1xf32>
    %4 = vector.shape_cast %3 : vector<4x16x1xf32> to vector<4x16x1xf32>
    %5 = vector.broadcast %4 : vector<4x16x1xf32> to vector<4x16x2xf32>
    %c0_4 = arith.constant 0 : index
    %c0_5 = arith.constant 0 : index
    %c0_6 = arith.constant 0 : index
    %6 = vector.load %arg1[%c0_4, %c0_5, %c0_6] : memref<4x16x16xf32, #tpu.memory_space<vmem>>, vector<4x16x16xf32>
    %7 = tpu.concatenate %2, %6, %5 in 2 : vector<4x16x2xf32>, vector<4x16x16xf32>, vector<4x16x2xf32> -> vector<4x16x20xf32>
    %c0_7 = arith.constant 0 : index
    %c2 = arith.constant 2 : index
    %c0_8 = arith.constant 0 : index
    %8 = vector.load %arg2[%c0_7, %c2, %c0_8] : memref<4x20x20xf32, #tpu.memory_space<vmem>>, vector<4x16x20xf32>
    tpu.vector_store %arg2[%c0_7, %c2, %c0_8], %7 {strides = array<i32>} : memref<4x20x20xf32, #tpu.memory_space<vmem>>, vector<4x16x20xf32>,
    %9 = vector.extract_strided_slice %7 {offsets = [0, 0, 0], sizes = [4, 1, 20], strides = [1, 1, 1]} : vector<4x16x20xf32> to vector<4x1x20xf32>
    %10 = vector.shape_cast %9 : vector<4x1x20xf32> to vector<4x1x20xf32>
    %11 = vector.broadcast %10 : vector<4x1x20xf32> to vector<4x2x20xf32>
    %c0_9 = arith.constant 0 : index
    %c0_10 = arith.constant 0 : index
    %c0_11 = arith.constant 0 : index
    %12 = vector.load %arg2[%c0_9, %c0_10, %c0_11] : memref<4x20x20xf32, #tpu.memory_space<vmem>>, vector<4x2x20xf32>
    tpu.vector_store %arg2[%c0_9, %c0_10, %c0_11], %11 {strides = array<i32>} : memref<4x20x20xf32, #tpu.memory_space<vmem>>, vector<4x2x20xf32>,
    %13 = vector.extract_strided_slice %7 {offsets = [0, 15, 0], sizes = [4, 1, 20], strides = [1, 1, 1]} : vector<4x16x20xf32> to vector<4x1x20xf32>
    %14 = vector.shape_cast %13 : vector<4x1x20xf32> to vector<4x1x20xf32>
    %15 = vector.broadcast %14 : vector<4x1x20xf32> to vector<4x2x20xf32>
    %c0_12 = arith.constant 0 : index
    %c18 = arith.constant 18 : index
    %c0_13 = arith.constant 0 : index
    %16 = vector.load %arg2[%c0_12, %c18, %c0_13] : memref<4x20x20xf32, #tpu.memory_space<vmem>>, vector<4x2x20xf32>
    tpu.vector_store %arg2[%c0_12, %c18, %c0_13], %15 {strides = array<i32>} : memref<4x20x20xf32, #tpu.memory_space<vmem>>, vector<4x2x20xf32>,
    return
  }
  func.func @transform_0(%arg0: i32) -> (i32, i32, i32) {
    %c0_i32 = arith.constant 0 : i32
    %c0_i32_0 = arith.constant 0 : i32
    %c0_i32_1 = arith.constant 0 : i32
    return %arg0, %c0_i32, %c0_i32_0 : i32, i32, i32
  }
  func.func @transform_1(%arg0: i32) -> (i32, i32, i32) {
    %c0_i32 = arith.constant 0 : i32
    %c0_i32_0 = arith.constant 0 : i32
    %c0_i32_1 = arith.constant 0 : i32
    return %arg0, %c0_i32, %c0_i32_0 : i32, i32, i32
  }
}

</mosaic_0001>

<llo_original>
// kernel: tpu_custom_call.1
$region0: #{tpu_custom_call.1}
  #allocation0 [shape = 'u32[]', space=smem, size = 0x4, offset = 0x4, fixed_abs, tag = 'smem constant byte address 0x4 - core index']
  #allocation1 [shape = 'u32[72,128]{1,0:T(1,128)}', space=vmem, size = 0x9000, scoped, tag = 'internal scratch']
  %s0 = inlined_call_operand.hbm [shape: f32[8,16,16], index: 0, kind: input, shape index: {}]
  %s1 = inlined_call_operand.vmem [shape: f32[8,20,20], index: 1, kind: output, shape index: {}]
  %s2 = sld [smem:[#allocation0]]
  $region41: #{tpu_custom_call.1} parent=0
    _
  %s4 = ssub.s32 1, %s2
  %s5 = scalar_select 0, %s4, %s2
  $region1: #{tpu_custom_call.1} parent=0
    #allocation2 [shape = 'u8[65536]{0}', space=vmem, size = 0x10000, scoped, tag = 'input window, operand 0']
    #allocation3 [shape = 's32[2]{0}', space=sflag, size = 0x8, scoped, tag = 'scoped memory for tpu_custom_call.1']
    %6 = vsyncpa [#allocation3], 0
    %s7 = scalar_lea.sflag [#allocation3], 1
    %8 = vsyncpa %s7, 0
    loop: start=0, step=1, limit=4
    $region2: #{tpu_custom_call.1} parent=1 // loop_pre_header
      _
    $region3: #{tpu_custom_call.1} parent=1 // loop_header
      %s10 = sphi 0, %s14
      %p11 = scmp.ge.s32.totalorder %s10, 4
      %s20 = sphi 0, %s22
      %s23 = sphi 0, %s20
      %s24 = sphi 0, %s23
      %s40 = sphi 0, %s24
      %s46 = sphi 0, %s48
      %s49 = sphi 0, %s46
      %s50 = sphi 0, %s49
      %s66 = sphi 0, %s50
    $region4: #{tpu_custom_call.1} parent=1 // loop_header_branch
      %13 = sbr.rel (%p11) target = $region8
    $region5: #{tpu_custom_call.1} parent=1 // loop_body
      %s15 = ssub.s32 %s10, 1
      %s16 = ssub.s32 %s10, 2
      %s17 = sadd.s32 %s10, 1
      %s18 = ssub.s32 %s10, %s17
      %p19 = scmp.eq.s32.totalorder %s18, 0
      %s21 = sadd.s32 %s20, 1
      %s22 = scalar_select %p19, %s20, %s21
      %p25 = pneg %p19
      %p26 = scmp.eq.s32.totalorder %s10, 1
      %p27 = por %p25, %p26
      %p28 = scmp.ne.s32.totalorder %s20, %s23
      %p29 = scmp.eq.s32.totalorder %s10, 0
      %p30 = por %p28, %p29
      %p31 = scmp.ne.s32.totalorder %s20, %s23
      %p32 = scmp.eq.s32.totalorder %s15, 1
      %p33 = por %p31, %p32
      %p34 = scmp.ne.s32.totalorder %s23, %s24
      %p35 = scmp.eq.s32.totalorder %s15, 0
      %p36 = por %p34, %p35
      %p37 = scmp.ne.s32.totalorder %s23, %s24
      %p38 = scmp.eq.s32.totalorder %s16, 1
      %p39 = por %p37, %p38
      %p41 = scmp.ne.s32.totalorder %s24, %s40
      %p42 = scmp.eq.s32.totalorder %s16, 0
      %p43 = por %p41, %p42
      %s44 = ssub.s32 %s10, %s17
      %p45 = scmp.eq.s32.totalorder %s44, 0
      %s47 = sadd.s32 %s46, 1
      %s48 = scalar_select %p45, %s46, %s47
      %p51 = pneg %p45
      %p52 = scmp.eq.s32.totalorder %s10, 1
      %p53 = por %p51, %p52
      %p54 = scmp.ne.s32.totalorder %s46, %s49
      %p55 = scmp.eq.s32.totalorder %s10, 0
      %p56 = por %p54, %p55
      %p57 = scmp.ne.s32.totalorder %s46, %s49
      %p58 = scmp.eq.s32.totalorder %s15, 1
      %p59 = por %p57, %p58
      %p60 = scmp.ne.s32.totalorder %s49, %s50
      %p61 = scmp.eq.s32.totalorder %s15, 0
      %p62 = por %p60, %p61
      %p63 = scmp.ne.s32.totalorder %s49, %s50
      %p64 = scmp.eq.s32.totalorder %s16, 1
      %p65 = por %p63, %p64
      %p67 = scmp.ne.s32.totalorder %s50, %s66
      %p68 = scmp.eq.s32.totalorder %s16, 0
      %p69 = por %p67, %p68
      %p70 = scmp.le.s32.totalorder 1, %s10
      %p71 = scmp.lt.s32.totalorder %s10, 3
      %p72 = pnand %p70, %p71
      %p73 = pneg %p72
      // Predicated region
      $region9: #{tpu_custom_call.1} parent=5 // pred_check
        _
      $region10: #{tpu_custom_call.1} parent=5 // pred_check_branch
        %75 = sbr.rel (%p72) target = $region12
      $region11: #{tpu_custom_call.1} parent=5 // pred_region
        %s76 = ssub.s32 %s10, 1
      $region12: #{tpu_custom_call.1} parent=5 // pred_fallthru
        _
      %p77 = scmp.lt.s32.totalorder %s10, 2
      // Predicated region
      $region13: #{tpu_custom_call.1} parent=5 // pred_check
        %p78 = pneg %p77
      $region14: #{tpu_custom_call.1} parent=5 // pred_check_branch
        %80 = sbr.rel (%p78) target = $region16
      $region15: #{tpu_custom_call.1} parent=5 // pred_region
        // Predicated region
        $region17: #{tpu_custom_call.1} parent=15 // pred_check
          %p81 = pneg %p30
        $region18: #{tpu_custom_call.1} parent=15 // pred_check_branch
          %83 = sbr.rel (%p81) target = $region20
        $region19: #{tpu_custom_call.1} parent=15 // pred_region
          %s84 = sand.u32 %s20, 1
          %s85 = scalar_lea.sflag [#allocation3], %s84
          %s86 = sand.u32 %s20, 1
          %s87 = smul.addr %s86, 64
          %s88 = scalar_lea.vmem [#allocation2], %s87
          %s89 = smul.u32 4, %s10
          %91 = vsyncadd %s85, 0
          %s92 = smul.addr %s89, 2
          %s93 = smul.addr %s92, 8
          %s94 = scalar_lea.hbm %s0, %s93
          %s95 = sshll.u32 %s94, 4
          %s96 = int_to_ptr.hbm [resolvable:$true] %s95
          %s97 = sshll.u32 %s88, 4
          %s98 = int_to_ptr.vmem [resolvable:$true] %s97
          %103 = dma.hbm_to_vmem [thread:$0]  %s96, 1024, %s98, %s85, 128, 128, 8
        $region20: #{tpu_custom_call.1} parent=15 // pred_fallthru
          _
      $region16: #{tpu_custom_call.1} parent=5 // pred_fallthru
        _
      %p104 = scmp.le.s32.totalorder 1, %s10
      %p105 = scmp.lt.s32.totalorder %s10, 3
      %p106 = pnand %p104, %p105
      %p107 = pneg %p106
      // Predicated region
      $region21: #{tpu_custom_call.1} parent=5 // pred_check
        _
      $region22: #{tpu_custom_call.1} parent=5 // pred_check_branch
        %109 = sbr.rel (%p106) target = $region24
      $region23: #{tpu_custom_call.1} parent=5 // pred_region
        %s110 = ssub.s32 %s10, 1
        %s111 = sand.u32 %s23, 1
        %s112 = scalar_lea.sflag [#allocation3], %s111
        %s113 = sand.u32 %s23, 1
        %s114 = smul.addr %s113, 64
        %s115 = scalar_lea.vmem [#allocation2], %s114
        // Predicated region
        $region25: #{tpu_custom_call.1} parent=23 // pred_check
          %p116 = pneg %p36
        $region26: #{tpu_custom_call.1} parent=23 // pred_check_branch
          %118 = sbr.rel (%p116) target = $region28
        $region27: #{tpu_custom_call.1} parent=23 // pred_region
          %120 = dma.done %s112, 1024
        $region28: #{tpu_custom_call.1} parent=23 // pred_fallthru
          _
        %s121 = sand.u32 %s23, 1
        %s122 = scalar_lea.sflag [#allocation3], %s121
        %s123 = sand.u32 %s23, 1
        %s124 = smul.addr %s123, 64
        %s125 = scalar_lea.vmem [#allocation2], %s124
        %p126 = pneg %p36
        %p127 = pneg %p33
        %p128 = pneg %p62
        %p129 = pneg %p59
        %s130 = smul.u32 4, %s15
        %p131 = scmp.lt.s32.totalorder %s130, 7
        %s132 = scalar_select %p131, %s130, 7
        %s133 = smul.addr %s132, 3
        %s134 = smul.addr %s133, 8
        %s135 = scalar_lea.vmem %s1, %s134
        %s136 = smul.u32 4, %s15
        %s137 = smul.u32 4, %s15
        %p138 = scmp.lt.s32.totalorder %s137, 7
        %s139 = scalar_select %p138, %s137, 7
        %s140 = smul.addr %s139, 3
        %s141 = smul.addr %s140, 8
        %s142 = scalar_lea.vmem %s1, %s141
        %s143 = smul.u32 4, %s15
        %v144 = vld [vmem:[%s115] sm:$0xff]
        %v145 = vld [vmem:[%s115 + $0x8] sm:$0xff]
        %v146 = vld [vmem:[%s115 + $0x10] sm:$0xff]
        %v147 = vld [vmem:[%s115 + $0x18] sm:$0xff]
        %v148 = vld [vmem:[%s115 + $0x20] sm:$0xff]
        %v149 = vld [vmem:[%s115 + $0x28] sm:$0xff]
        %v150 = vld [vmem:[%s115 + $0x30] sm:$0xff]
        %v151 = vld [vmem:[%s115 + $0x38] sm:$0xff]
        %153 = vset.pattern.permute.xlu0 0
        %154 = vperm.xlu0 %153, %v144
        %v155 = vpop.permute.xlu0 %154
        %158 = vset.pattern.permute.xlu0 0
        %159 = vperm.xlu0 %158, %v145
        %v160 = vpop.permute.xlu0 %159
        %163 = vset.pattern.permute.xlu0 0
        %164 = vperm.xlu0 %163, %v146
        %v165 = vpop.permute.xlu0 %164
        %168 = vset.pattern.permute.xlu0 0
        %169 = vperm.xlu0 %168, %v147
        %v170 = vpop.permute.xlu0 %169
        %173 = vset.pattern.permute.xlu0 0
        %174 = vperm.xlu0 %173, %v148
        %v175 = vpop.permute.xlu0 %174
        %178 = vset.pattern.permute.xlu0 0
        %179 = vperm.xlu0 %178, %v149
        %v180 = vpop.permute.xlu0 %179
        %183 = vset.pattern.permute.xlu0 0
        %184 = vperm.xlu0 %183, %v150
        %v185 = vpop.permute.xlu0 %184
        %188 = vset.pattern.permute.xlu0 0
        %189 = vperm.xlu0 %188, %v151
        %v190 = vpop.permute.xlu0 %189
        %192 = vset.pattern.permute.xlu0 15
        %193 = vperm.xlu0 %192, %v144
        %v194 = vpop.permute.xlu0 %193
        %196 = vset.pattern.permute.xlu0 15
        %197 = vperm.xlu0 %196, %v145
        %v198 = vpop.permute.xlu0 %197
        %200 = vset.pattern.permute.xlu0 15
        %201 = vperm.xlu0 %200, %v146
        %v202 = vpop.permute.xlu0 %201
        %204 = vset.pattern.permute.xlu0 15
        %205 = vperm.xlu0 %204, %v147
        %v206 = vpop.permute.xlu0 %205
        %208 = vset.pattern.permute.xlu0 15
        %209 = vperm.xlu0 %208, %v148
        %v210 = vpop.permute.xlu0 %209
        %212 = vset.pattern.permute.xlu0 15
        %213 = vperm.xlu0 %212, %v149
        %v214 = vpop.permute.xlu0 %213
        %216 = vset.pattern.permute.xlu0 15
        %217 = vperm.xlu0 %216, %v150
        %v218 = vpop.permute.xlu0 %217
        %220 = vset.pattern.permute.xlu0 15
        %221 = vperm.xlu0 %220, %v151
        %v222 = vpop.permute.xlu0 %221
        %224 = vrot.lane.b32.xlu0 %v144, 2
        %v225 = vpop.permute.xlu0 %224
        %226 = vrot.lane.b32.xlu0 %v145, 2
        %v227 = vpop.permute.xlu0 %226
        %228 = vrot.lane.b32.xlu0 %v146, 2
        %v229 = vpop.permute.xlu0 %228
        %230 = vrot.lane.b32.xlu0 %v147, 2
        %v231 = vpop.permute.xlu0 %230
        %232 = vrot.lane.b32.xlu0 %v148, 2
        %v233 = vpop.permute.xlu0 %232
        %234 = vrot.lane.b32.xlu0 %v149, 2
        %v235 = vpop.permute.xlu0 %234
        %236 = vrot.lane.b32.xlu0 %v150, 2
        %v237 = vpop.permute.xlu0 %236
        %238 = vrot.lane.b32.xlu0 %v151, 2
        %v239 = vpop.permute.xlu0 %238
        %vm248 = vcmask 15360
        %v249 = vsel %vm248, %v155, %v225
        %v250 = vsel %vm248, %v160, %v227
        %v251 = vsel %vm248, %v165, %v229
        %v252 = vsel %vm248, %v170, %v231
        %v253 = vsel %vm248, %v175, %v233
        %v254 = vsel %vm248, %v180, %v235
        %v255 = vsel %vm248, %v185, %v237
        %v256 = vsel %vm248, %v190, %v239
        %vm257 = vcmask 146432
        %v258 = vsel %vm257, %v249, %v194
        %v259 = vsel %vm257, %v250, %v198
        %v260 = vsel %vm257, %v251, %v202
        %v261 = vsel %vm257, %v252, %v206
        %v262 = vsel %vm257, %v253, %v210
        %v263 = vsel %vm257, %v254, %v214
        %v264 = vsel %vm257, %v255, %v218
        %v265 = vsel %vm257, %v256, %v222
        %vm266 = vcmask 162816
        %267 = vst.msk [vmem:[%s142 + $0x2] sm:$0xff] %vm266, %v258
        %268 = vst.msk [vmem:[%s142 + $0xa] sm:$0xff] %vm266, %v259
        %269 = vst.msk [vmem:[%s142 + $0x1a] sm:$0xff] %vm266, %v260
        %270 = vst.msk [vmem:[%s142 + $0x22] sm:$0xff] %vm266, %v261
        %271 = vst.msk [vmem:[%s142 + $0x32] sm:$0xff] %vm266, %v262
        %272 = vst.msk [vmem:[%s142 + $0x3a] sm:$0xff] %vm266, %v263
        %273 = vst.msk [vmem:[%s142 + $0x4a] sm:$0xff] %vm266, %v264
        %274 = vst.msk [vmem:[%s142 + $0x52] sm:$0xff] %vm266, %v265
        %v275 = vperm.slane %v258, 0
        %v276 = vperm.slane %v260, 0
        %v277 = vperm.slane %v262, 0
        %v278 = vperm.slane %v264, 0
        %vm279 = vcmask 156672
        %280 = vst.msk [vmem:[%s142] sm:$0x3] %vm279, %v275
        %281 = vst.msk [vmem:[%s142 + $0x18] sm:$0x3] %vm279, %v276
        %282 = vst.msk [vmem:[%s142 + $0x30] sm:$0x3] %vm279, %v277
        %283 = vst.msk [vmem:[%s142 + $0x48] sm:$0x3] %vm279, %v278
        %v284 = vperm.slane %v259, 7
        %v285 = vperm.slane %v261, 7
        %v286 = vperm.slane %v263, 7
        %v287 = vperm.slane %v265, 7
        %288 = vst.msk [vmem:[%s142 + $0x12] sm:$0x3] %vm279, %v284
        %289 = vst.msk [vmem:[%s142 + $0x2a] sm:$0x3] %vm279, %v285
        %290 = vst.msk [vmem:[%s142 + $0x42] sm:$0x3] %vm279, %v286
        %291 = vst.msk [vmem:[%s142 + $0x5a] sm:$0x3] %vm279, %v287
        %s292 = smul.u32 4, %s15
        %p293 = scmp.lt.s32.totalorder %s292, 7
        %s294 = scalar_select %p293, %s292, 7
        %s295 = smul.addr %s294, 3
        %s296 = smul.addr %s295, 8
        %s297 = scalar_lea.vmem %s1, %s296
        // Predicated region
        $region29: #{tpu_custom_call.1} parent=23 // pred_check
          %p298 = pneg %p59
        $region30: #{tpu_custom_call.1} parent=23 // pred_check_branch
          %300 = sbr.rel (%p298) target = $region32
        $region31: #{tpu_custom_call.1} parent=23 // pred_region
          %s301 = smul.u32 4, %s15
        $region32: #{tpu_custom_call.1} parent=23 // pred_fallthru
          _
      $region24: #{tpu_custom_call.1} parent=5 // pred_fallthru
        _
      %p302 = scmp.le.s32.totalorder 2, %s10
      // Predicated region
      $region33: #{tpu_custom_call.1} parent=5 // pred_check
        %p303 = pneg %p302
      $region34: #{tpu_custom_call.1} parent=5 // pred_check_branch
        %305 = sbr.rel (%p303) target = $region36
      $region35: #{tpu_custom_call.1} parent=5 // pred_region
        %s306 = ssub.s32 %s10, 2
        // Predicated region
        $region37: #{tpu_custom_call.1} parent=35 // pred_check
          %p307 = pneg %p65
        $region38: #{tpu_custom_call.1} parent=35 // pred_check_branch
          %309 = sbr.rel (%p307) target = $region40
        $region39: #{tpu_custom_call.1} parent=35 // pred_region
          %s310 = smul.u32 4, %s16
          %p311 = scmp.lt.s32.totalorder %s310, 7
          %s312 = scalar_select %p311, %s310, 7
          %s313 = smul.addr %s312, 3
          %s314 = smul.addr %s313, 8
          %s315 = scalar_lea.vmem %s1, %s314
        $region40: #{tpu_custom_call.1} parent=35 // pred_fallthru
          _
      $region36: #{tpu_custom_call.1} parent=5 // pred_fallthru
        _
    $region6: #{tpu_custom_call.1} parent=1 // loop_footer
      %s14 = sadd.s32 1, %s10
    $region7: #{tpu_custom_call.1} parent=1 // loop_footer_branch
      %9 = sbr.rel target = $region3
    $region8: #{tpu_custom_call.1} parent=1 // loop_exit
      _
    %316 = vsyncpa [#allocation3], 1
    %s317 = scalar_lea.sflag [#allocation3], 1
    %318 = vsyncpa %s317, 1

</llo_original>
